<compile_context>
chip_gen: v6e
topology: v6e:2x2x1
jax: 0.10.0
libtpu: 0.0.40
codegen_flags: <defaults>
</compile_context>

<pallas_src>
import functools

import jax
import jax.numpy as jnp
from jax import lax
from jax.experimental import pallas as pl
from jax.experimental.pallas import tpu as pltpu


def _round_up(x, m):
    return ((x + m - 1) // m) * m


def _vmem_budget_bytes():
    """Physical VMEM with ~25% headroom for compiler-internal scratch."""
    try:
        phys = int(pltpu.get_tpu_info().vmem_capacity_bytes)
    except Exception:
        phys = 64 * 1024 * 1024  # conservative (v7x per-TC size); works everywhere
    return (phys * 3) // 4


_VMEM_BUDGET = _vmem_budget_bytes()


def _pick_bm(batch, block_m):
    """Batch tile: multiple of 8, >=2 grid tiles when possible, sane padding."""
    bm = min(block_m, _round_up(batch, 8))
    if batch > 8:
        # v7x megacore: aim for at least 2 batch tiles so both TCs get work.
        half = max(8, _round_up(-(-batch // 2), 8))
        bm = min(bm, half)
    # Avoid pathological batch padding (padded tail larger than half a tile).
    while bm > 8 and (_round_up(batch, bm) - batch) * 2 > bm:
        bm = max(8, _round_up(bm // 2, 8))
    return bm


def _pick_bh(hid_p, block_h):
    """Largest 128-multiple <= block_h that divides hid_p (no dead hidden cols)."""
    best = 128
    for cand in range(128, min(block_h, hid_p) + 1, 128):
        if hid_p % cand == 0:
            best = cand
    return best


def _resident_vmem_bytes(bm, in_p, hid_p, out_p, x_item, w_item):
    # Conservative: count all pipelined buffers double-buffered + f32 temps.
    return (2 * bm * in_p * x_item
            + 2 * (in_p * hid_p + hid_p + hid_p * out_p + out_p) * w_item
            + 2 * bm * out_p * x_item
            + bm * hid_p * 4        # h intermediate (f32)
            + bm * out_p * 4)       # matmul2 result (f32)


def _tiled_vmem_bytes(bm, in_p, bh, out_p, x_item, w_item):
    return (2 * bm * in_p * x_item
            + 2 * (in_p * bh + bh + bh * out_p + out_p) * w_item
            + 2 * bm * out_p * x_item
            + bm * out_p * 4        # accumulator scratch (f32)
            + bm * bh * 4)          # h intermediate (f32)


def _gelu_f32(h, exact):
    if exact:
        # torch.nn.GELU() default (approximate='none').
        inv_sqrt2 = jnp.float32(0.7071067811865476)
        return 0.5 * h * (1.0 + lax.erf(h * inv_sqrt2))
    # torch.nn.GELU(approximate='tanh'): single EUP tanh, overlaps with MXU work.
    c = jnp.float32(0.7978845608028654)  # sqrt(2/pi)
    return 0.5 * h * (1.0 + jnp.tanh(c * (h + 0.044715 * (h * h * h))))


def _mlp_kernel_resident(x_ref, w1_ref, b1_ref, w2_ref, b2_ref, o_ref, *,
                         exact_gelu):
    # Grid: (batch tiles,).  Weights stay resident in VMEM (constant index map).
    h = jnp.dot(x_ref[...], w1_ref[...], preferred_element_type=jnp.float32)
    h = h + b1_ref[...].astype(jnp.float32)            # (TM, H) + (1, H)
    h = _gelu_f32(h, exact_gelu)
    out = jnp.dot(h.astype(w2_ref.dtype), w2_ref[...],
                  preferred_element_type=jnp.float32)
    out = out + b2_ref[...].astype(jnp.float32)
    o_ref[...] = out.astype(o_ref.dtype)


def _mlp_kernel_tiled(x_ref, w1_ref, b1_ref, w2_ref, b2_ref, o_ref, acc_ref, *,
                      exact_gelu):
    # Grid: (batch tiles, hidden tiles).  Hidden axis is a reduction.
    j = pl.program_id(1)

    @pl.when(j == 0)
    def _init():
        # Fold the output bias into the accumulator initialization.
        acc_ref[...] = jnp.broadcast_to(
            b2_ref[...].astype(jnp.float32), acc_ref.shape)

    h = jnp.dot(x_ref[...], w1_ref[...], preferred_element_type=jnp.float32)
    h = h + b1_ref[...].astype(jnp.float32)             # (TM, TH) + (1, TH)
    h = _gelu_f32(h, exact_gelu)
    acc_ref[...] += jnp.dot(h.astype(w2_ref.dtype), w2_ref[...],
                            preferred_element_type=jnp.float32)

    @pl.when(j == pl.num_programs(1) - 1)
    def _store():
        o_ref[...] = acc_ref[...].astype(o_ref.dtype)


def prepare_mlp_params(w1, b1, w2, b2):
    """Pad weights/biases to lane-dense (128-multiple) shapes ONCE.

    Call once at init and reuse the returned arrays across forward calls.
    Weights are stored as (in, out) — the transpose of nn.Linear's layout.
    Zero padding is exact: padded input cols hit zero W1 rows; padded hidden
    cols have zero weight+bias (GELU(0)=0) and zero W2 rows.
    """
    in_f, hid_f = w1.shape
    out_f = w2.shape[1]
    in_p = _round_up(in_f, 128)
    hid_p = _round_up(hid_f, 128)
    out_p = _round_up(out_f, 128)
    w1p = jnp.pad(w1, ((0, in_p - in_f), (0, hid_p - hid_f)))
    b1p = jnp.pad(b1, (0, hid_p - hid_f)).reshape(1, hid_p)
    w2p = jnp.pad(w2, ((0, hid_p - hid_f), (0, out_p - out_f)))
    b2p = jnp.pad(b2, (0, out_p - out_f)).reshape(1, out_p)
    return w1p, b1p, w2p, b2p


@functools.partial(
    jax.jit,
    static_argnames=("out_features", "block_m", "block_h", "gelu_approx"))
def mlp_forward(x, w1p, b1p, w2p, b2p, *, out_features, block_m=256,
                block_h=512, gelu_approx="none"):
    """x: (B, in_features).  w*/b* must come from prepare_mlp_params()."""
    B, in_f = x.shape
    in_p, hid_p = w1p.shape
    out_p = w2p.shape[1]
    assert in_f <= in_p and out_features <= out_p

    x_item = x.dtype.itemsize
    w_item = w1p.dtype.itemsize
    exact_gelu = (gelu_approx == "none")

    bm = _pick_bm(B, block_m)

    compiler_params_common = dict(vmem_limit_bytes=_VMEM_BUDGET)

    if _resident_vmem_bytes(bm, in_p, hid_p, out_p, x_item, w_item) <= _VMEM_BUDGET:
        # ---- Resident-weights path: weights read from HBM exactly once. ----
        b_p = _round_up(B, bm)
        xp = jnp.pad(x, ((0, b_p - B), (0, in_p - in_f)))
        grid = (b_p // bm,)

        cost = pl.CostEstimate(
            flops=2 * b_p * (in_p * hid_p + hid_p * out_p),
            transcendentals=b_p * hid_p,
            bytes_accessed=(xp.size * x_item
                            + (w1p.size + b1p.size + w2p.size + b2p.size) * w_item
                            + b_p * out_p * x_item),
        )

        out_padded = pl.pallas_call(
            functools.partial(_mlp_kernel_resident, exact_gelu=exact_gelu),
            out_shape=jax.ShapeDtypeStruct((b_p, out_p), x.dtype),
            grid_spec=pltpu.PrefetchScalarGridSpec(
                num_scalar_prefetch=0,
                grid=grid,
                in_specs=[
                    pl.BlockSpec((bm, in_p), lambda i: (i, 0)),      # x tile
                    pl.BlockSpec((in_p, hid_p), lambda i: (0, 0)),   # W1 (resident)
                    pl.BlockSpec((1, hid_p), lambda i: (0, 0)),      # b1 (resident)
                    pl.BlockSpec((hid_p, out_p), lambda i: (0, 0)),  # W2 (resident)
                    pl.BlockSpec((1, out_p), lambda i: (0, 0)),      # b2 (resident)
                ],
                out_specs=pl.BlockSpec((bm, out_p), lambda i: (i, 0)),
            ),
            compiler_params=pltpu.CompilerParams(
                dimension_semantics=("parallel",), **compiler_params_common),
            cost_estimate=cost,
        )(xp, w1p, b1p, w2p, b2p)
    else:
        # ---- Hidden-reduction path: weights streamed, f32 acc in VMEM. ----
        bh = _pick_bh(hid_p, block_h)
        # Shrink tiles until the VMEM estimate fits the budget.
        while (_tiled_vmem_bytes(bm, in_p, bh, out_p, x_item, w_item)
               > _VMEM_BUDGET and bh > 128):
            new_bh = _pick_bh(hid_p, bh - 128)
            if new_bh == bh:
                break
            bh = new_bh
        while (_tiled_vmem_bytes(bm, in_p, bh, out_p, x_item, w_item)
               > _VMEM_BUDGET and bm > 8):
            bm = max(8, _round_up(bm // 2, 8))
        # TODO(synk): for in_features too large for an (in_p, bh) W1 tile in
        # VMEM, add a K grid axis over in_features as well (same acc pattern).

        b_p = _round_up(B, bm)
        xp = jnp.pad(x, ((0, b_p - B), (0, in_p - in_f)))
        grid = (b_p // bm, hid_p // bh)
        grid_i = grid[0]

        cost = pl.CostEstimate(
            flops=2 * b_p * (in_p * hid_p + hid_p * out_p),
            transcendentals=b_p * hid_p,
            # Weights are re-streamed once per batch tile; x / b2 / out once.
            bytes_accessed=(xp.size * x_item
                            + grid_i * (w1p.size + b1p.size + w2p.size) * w_item
                            + b2p.size * w_item
                            + b_p * out_p * x_item),
        )

        out_padded = pl.pallas_call(
            functools.partial(_mlp_kernel_tiled, exact_gelu=exact_gelu),
            out_shape=jax.ShapeDtypeStruct((b_p, out_p), x.dtype),
            grid_spec=pltpu.PrefetchScalarGridSpec(
                num_scalar_prefetch=0,
                grid=grid,
                in_specs=[
                    pl.BlockSpec((bm, in_p), lambda i, j: (i, 0)),    # x tile
                    pl.BlockSpec((in_p, bh), lambda i, j: (0, j)),    # W1 col tile
                    pl.BlockSpec((1, bh), lambda i, j: (0, j)),       # b1 tile
                    pl.BlockSpec((bh, out_p), lambda i, j: (j, 0)),   # W2 row tile
                    pl.BlockSpec((1, out_p), lambda i, j: (0, 0)),    # b2
                ],
                out_specs=pl.BlockSpec((bm, out_p), lambda i, j: (i, 0)),
                scratch_shapes=[pltpu.VMEM((bm, out_p), jnp.float32)],
            ),
            compiler_params=pltpu.CompilerParams(
                dimension_semantics=("parallel", "arbitrary"),
                **compiler_params_common),
            cost_estimate=cost,
        )(xp, w1p, b1p, w2p, b2p)

    return out_padded[:B, :out_features]


def init_mlp_params(key, in_features, hidden_features, out_features,
                    dtype=jnp.float32):
    """Deterministic init mimicking nn.Linear default (U[-1/sqrt(fan_in), +]).

    For production, pass dtype=jnp.bfloat16: the kernel keeps operands in
    their native dtype (bf16 goes straight to the MXU) with f32 accumulation.
    """
    k1, k2, k3, k4 = jax.random.split(key, 4)
    bound1 = 1.0 / jnp.sqrt(in_features)
    bound2 = 1.0 / jnp.sqrt(hidden_features)
    # Stored already transposed relative to PyTorch: (in, out).
    w1 = jax.random.uniform(k1, (in_features, hidden_features), dtype,
                            minval=-bound1, maxval=bound1)
    b1 = jax.random.uniform(k2, (hidden_features,), dtype,
                            minval=-bound1, maxval=bound1)
    w2 = jax.random.uniform(k3, (hidden_features, out_features), dtype,
                            minval=-bound2, maxval=bound2)
    b2 = jax.random.uniform(k4, (out_features,), dtype,
                            minval=-bound2, maxval=bound2)
    return w1, b1, w2, b2


def mlp_reference(x, w1, b1, w2, b2):
    h = x @ w1 + b1
    h = 0.5 * h * (1.0 + lax.erf(h / jnp.sqrt(2.0).astype(h.dtype)))
    return h @ w2 + b2


if __name__ == "__main__":
    in_features, hidden_features, out_features = 16, 32, 8
    batch = 8

    key = jax.random.PRNGKey(0)
    kx, kp = jax.random.split(key)
    x = jax.random.normal(kx, (batch, in_features), dtype=jnp.float32)
    w1, b1, w2, b2 = init_mlp_params(kp, in_features, hidden_features,
                                     out_features)

    # Pad weights once (not in the per-call hot path).
    w1p, b1p, w2p, b2p = prepare_mlp_params(w1, b1, w2, b2)

    out = mlp_forward(x, w1p, b1p, w2p, b2p, out_features=out_features)
    out = jax.block_until_ready(out)

    ref = mlp_reference(x, w1, b1, w2, b2)
    assert out.shape == (batch, out_features)
    assert jnp.allclose(out, ref, atol=1e-5, rtol=1e-5), "mismatch vs reference"

    print("KERNEL_OK")
</pallas_src>

<mosaic_0001>
module attributes {stable_mosaic.version = 11 : i64} {
  func.func @_mlp_kernel_resident(%arg0: i32, %arg1: memref<8x128xf32, #tpu.memory_space<vmem>>, %arg2: memref<128x128xf32, #tpu.memory_space<vmem>>, %arg3: memref<1x128xf32, #tpu.memory_space<vmem>>, %arg4: memref<128x128xf32, #tpu.memory_space<vmem>>, %arg5: memref<1x128xf32, #tpu.memory_space<vmem>>, %arg6: memref<8x128xf32, #tpu.memory_space<vmem>>) attributes {dimension_semantics = [#tpu.dimension_semantics<parallel>], iteration_bounds = array<i64: 1>, scalar_prefetch = 0 : i64, scratch_operands = 0 : i64, tpu.core_type = #tpu.core_type<tc>, window_params = [{transform_indices = @transform_0, window_bounds = array<i64: 8, 128>}, {pipeline_mode = #tpu.pipeline_mode<synchronous>, transform_indices = @transform_1, window_bounds = array<i64: 128, 128>}, {pipeline_mode = #tpu.pipeline_mode<synchronous>, transform_indices = @transform_2, window_bounds = array<i64: 1, 128>}, {pipeline_mode = #tpu.pipeline_mode<synchronous>, transform_indices = @transform_3, window_bounds = array<i64: 128, 128>}, {pipeline_mode = #tpu.pipeline_mode<synchronous>, transform_indices = @transform_4, window_bounds = array<i64: 1, 128>}, {transform_indices = @transform_5, window_bounds = array<i64: 8, 128>}]} {
    %c0 = arith.constant 0 : index
    %c0_0 = arith.constant 0 : index
    %0 = vector.load %arg1[%c0, %c0_0] : memref<8x128xf32, #tpu.memory_space<vmem>>, vector<8x128xf32>
    %c0_1 = arith.constant 0 : index
    %c0_2 = arith.constant 0 : index
    %1 = vector.load %arg2[%c0_1, %c0_2] : memref<128x128xf32, #tpu.memory_space<vmem>>, vector<128x128xf32>
    %cst = arith.constant dense<0.000000e+00> : vector<8x128xf32>
    %2 = tpu.matmul %0, %1, %cst {dimension_numbers = #tpu.dot_dimension_numbers<[1], [0], [0], [1], [0, 0, 1, 1], [], []>} : vector<8x128xf32>, vector<128x128xf32>, vector<8x128xf32> -> vector<8x128xf32>
    %c0_3 = arith.constant 0 : index
    %c0_4 = arith.constant 0 : index
    %3 = vector.load %arg3[%c0_3, %c0_4] : memref<1x128xf32, #tpu.memory_space<vmem>>, vector<1x128xf32>
    %4 = vector.broadcast %3 : vector<1x128xf32> to vector<8x128xf32>
    %5 = arith.addf %2, %4 : vector<8x128xf32>
    %cst_5 = arith.constant 5.000000e-01 : f32
    %6 = vector.broadcast %cst_5 : f32 to vector<8x128xf32>
    %7 = arith.mulf %6, %5 : vector<8x128xf32>
    %cst_6 = arith.constant 0.707106769 : f32
    %8 = vector.broadcast %cst_6 : f32 to vector<8x128xf32>
    %9 = arith.mulf %5, %8 : vector<8x128xf32>
    %10 = math.erf %9 : vector<8x128xf32>
    %cst_7 = arith.constant 1.000000e+00 : f32
    %11 = vector.broadcast %cst_7 : f32 to vector<8x128xf32>
    %12 = arith.addf %11, %10 : vector<8x128xf32>
    %13 = arith.mulf %7, %12 : vector<8x128xf32>
    %c0_8 = arith.constant 0 : index
    %c0_9 = arith.constant 0 : index
    %14 = vector.load %arg4[%c0_8, %c0_9] : memref<128x128xf32, #tpu.memory_space<vmem>>, vector<128x128xf32>
    %cst_10 = arith.constant dense<0.000000e+00> : vector<8x128xf32>
    %15 = tpu.matmul %13, %14, %cst_10 {dimension_numbers = #tpu.dot_dimension_numbers<[1], [0], [0], [1], [0, 0, 1, 1], [], []>} : vector<8x128xf32>, vector<128x128xf32>, vector<8x128xf32> -> vector<8x128xf32>
    %c0_11 = arith.constant 0 : index
    %c0_12 = arith.constant 0 : index
    %16 = vector.load %arg5[%c0_11, %c0_12] : memref<1x128xf32, #tpu.memory_space<vmem>>, vector<1x128xf32>
    %17 = vector.broadcast %16 : vector<1x128xf32> to vector<8x128xf32>
    %18 = arith.addf %15, %17 : vector<8x128xf32>
    %c0_13 = arith.constant 0 : index
    %c0_14 = arith.constant 0 : index
    %19 = vector.load %arg6[%c0_13, %c0_14] : memref<8x128xf32, #tpu.memory_space<vmem>>, vector<8x128xf32>
    tpu.vector_store %arg6[%c0_13, %c0_14], %18 {strides = array<i32>} : memref<8x128xf32, #tpu.memory_space<vmem>>, vector<8x128xf32>,
    return
  }
  func.func @transform_0(%arg0: i32) -> (i32, i32) {
    %c0_i32 = arith.constant 0 : i32
    %c0_i32_0 = arith.constant 0 : i32
    return %arg0, %c0_i32 : i32, i32
  }
  func.func @transform_1(%arg0: i32) -> (i32, i32) {
    %c0_i32 = arith.constant 0 : i32
    %c0_i32_0 = arith.constant 0 : i32
    %c0_i32_1 = arith.constant 0 : i32
    return %c0_i32, %c0_i32_0 : i32, i32
  }
  func.func @transform_2(%arg0: i32) -> (i32, i32) {
    %c0_i32 = arith.constant 0 : i32
    %c0_i32_0 = arith.constant 0 : i32
    %c0_i32_1 = arith.constant 0 : i32
    return %c0_i32, %c0_i32_0 : i32, i32
  }
  func.func @transform_3(%arg0: i32) -> (i32, i32) {
    %c0_i32 = arith.constant 0 : i32
    %c0_i32_0 = arith.constant 0 : i32
    %c0_i32_1 = arith.constant 0 : i32
    return %c0_i32, %c0_i32_0 : i32, i32
  }
  func.func @transform_4(%arg0: i32) -> (i32, i32) {
    %c0_i32 = arith.constant 0 : i32
    %c0_i32_0 = arith.constant 0 : i32
    %c0_i32_1 = arith.constant 0 : i32
    return %c0_i32, %c0_i32_0 : i32, i32
  }
  func.func @transform_5(%arg0: i32) -> (i32, i32) {
    %c0_i32 = arith.constant 0 : i32
    %c0_i32_0 = arith.constant 0 : i32
    return %arg0, %c0_i32 : i32, i32
  }
}

</mosaic_0001>

<llo_original>
// kernel: mlp_forward.1
$region0: #{mlp_forward.1}
  #allocation0 [shape = 'u32[]', space=smem, size = 0x4, offset = 0x4, fixed_abs, tag = 'smem constant byte address 0x4 - core index']
  #allocation1 [shape = 'u32[144,128]{1,0:T(1,128)}', space=vmem, size = 0x12000, scoped, tag = 'internal scratch']
  %s0 = inlined_call_operand.vmem [shape: f32[8,128], index: 0, kind: input, shape index: {}]
  %s1 = inlined_call_operand.hbm [shape: f32[128,128], index: 1, kind: input, shape index: {}]
  %s2 = inlined_call_operand.vmem [shape: f32[1,128], index: 2, kind: input, shape index: {}]
  %s3 = inlined_call_operand.hbm [shape: f32[128,128], index: 3, kind: input, shape index: {}]
  %s4 = inlined_call_operand.vmem [shape: f32[1,128], index: 4, kind: input, shape index: {}]
  %s5 = inlined_call_operand.hbm [shape: f32[8,128], index: 5, kind: output, shape index: {}]
  %s6 = sld [smem:[#allocation0]]
  $region38: #{mlp_forward.1} parent=0
    _
  %s8 = ssub.s32 1, %s6
  %s9 = scalar_select 0, %s8, %s6
  $region1: #{mlp_forward.1} parent=0
    #allocation2 [shape = 'u8[65536]{0}', space=vmem, size = 0x10000, scoped, tag = 'input window, operand 1, single buffered']
    #allocation3 [shape = 's32[1]{0}', space=sflag, size = 0x4, scoped, tag = 'scoped memory for mlp_forward.1']
    #allocation4 [shape = 's32[1]{0}', space=sflag, size = 0x4, scoped, tag = 'scoped memory for mlp_forward.1']
    #allocation5 [shape = 'u8[65536]{0}', space=vmem, size = 0x10000, scoped, tag = 'input window, operand 3, single buffered']
    #allocation6 [shape = 's32[1]{0}', space=sflag, size = 0x4, scoped, tag = 'scoped memory for mlp_forward.1']
    #allocation7 [shape = 'u8[4096]{0}', space=vmem, size = 0x1000, scoped, tag = 'output window, operand 0, single buffered']
    %10 = vsyncpa [#allocation3], 0
    %11 = vsyncpa [#allocation6], 0
    %12 = vsyncpa [#allocation4], 0
    // Predicated region
    $region2: #{mlp_forward.1} parent=1 // pred_check
      _
    $region3: #{mlp_forward.1} parent=1 // pred_check_branch
      %14 = sbr.rel (0) target = $region5
    $region4: #{mlp_forward.1} parent=1 // pred_region
      _
    $region5: #{mlp_forward.1} parent=1 // pred_fallthru
      _
    // Predicated region
    $region6: #{mlp_forward.1} parent=1 // pred_check
      _
    $region7: #{mlp_forward.1} parent=1 // pred_check_branch
      %16 = sbr.rel (0) target = $region9
    $region8: #{mlp_forward.1} parent=1 // pred_region
      %s18 = ssub.s32 2048, 2048
      %19 = vsyncadd [#allocation3], %s18
      %s20 = sshll.u32 [#allocation2], 4
      %s21 = int_to_ptr.vmem [resolvable:$true] %s20
      %26 = dma.hbm_to_vmem [thread:$0]  %s1, 2048, %s21, [#allocation3], 128, 128, 8
    $region9: #{mlp_forward.1} parent=1 // pred_fallthru
      _
    // Predicated region
    $region10: #{mlp_forward.1} parent=1 // pred_check
      _
    $region11: #{mlp_forward.1} parent=1 // pred_check_branch
      %28 = sbr.rel (0) target = $region13
    $region12: #{mlp_forward.1} parent=1 // pred_region
      _
    $region13: #{mlp_forward.1} parent=1 // pred_fallthru
      _
    // Predicated region
    $region14: #{mlp_forward.1} parent=1 // pred_check
      _
    $region15: #{mlp_forward.1} parent=1 // pred_check_branch
      %30 = sbr.rel (0) target = $region17
    $region16: #{mlp_forward.1} parent=1 // pred_region
      %s32 = ssub.s32 2048, 2048
      %33 = vsyncadd [#allocation6], %s32
      %s34 = sshll.u32 [#allocation5], 4
      %s35 = int_to_ptr.vmem [resolvable:$true] %s34
      %40 = dma.hbm_to_vmem [thread:$0]  %s3, 2048, %s35, [#allocation6], 128, 128, 8
    $region17: #{mlp_forward.1} parent=1 // pred_fallthru
      _
    // Predicated region
    $region18: #{mlp_forward.1} parent=1 // pred_check
      _
    $region19: #{mlp_forward.1} parent=1 // pred_check_branch
      %42 = sbr.rel (0) target = $region21
    $region20: #{mlp_forward.1} parent=1 // pred_region
      _
    $region21: #{mlp_forward.1} parent=1 // pred_fallthru
      _
    // Predicated region
    $region22: #{mlp_forward.1} parent=1 // pred_check
      _
    $region23: #{mlp_forward.1} parent=1 // pred_check_branch
      %44 = sbr.rel (0) target = $region25
    $region24: #{mlp_forward.1} parent=1 // pred_region
      %45 = dma.done [#allocation3], 2048
    $region25: #{mlp_forward.1} parent=1 // pred_fallthru
      _
    // Predicated region
    $region26: #{mlp_forward.1} parent=1 // pred_check
      _
    $region27: #{mlp_forward.1} parent=1 // pred_check_branch
      %47 = sbr.rel (0) target = $region29
    $region28: #{mlp_forward.1} parent=1 // pred_region
      %48 = dma.done [#allocation6], 2048
    $region29: #{mlp_forward.1} parent=1 // pred_fallthru
      _
    %v49 = vld [vmem:[%s0] sm:$0xff]
    %v50 = vld [vmem:[#allocation2] sm:$0xff]
    %v51 = vld [vmem:[#allocation2 + $0x8] sm:$0xff]
    %v52 = vld [vmem:[#allocation2 + $0x10] sm:$0xff]
    %v53 = vld [vmem:[#allocation2 + $0x18] sm:$0xff]
    %v54 = vld [vmem:[#allocation2 + $0x20] sm:$0xff]
    %v55 = vld [vmem:[#allocation2 + $0x28] sm:$0xff]
    %v56 = vld [vmem:[#allocation2 + $0x30] sm:$0xff]
    %v57 = vld [vmem:[#allocation2 + $0x38] sm:$0xff]
    %v58 = vld [vmem:[#allocation2 + $0x40] sm:$0xff]
    %v59 = vld [vmem:[#allocation2 + $0x48] sm:$0xff]
    %v60 = vld [vmem:[#allocation2 + $0x50] sm:$0xff]
    %v61 = vld [vmem:[#allocation2 + $0x58] sm:$0xff]
    %v62 = vld [vmem:[#allocation2 + $0x60] sm:$0xff]
    %v63 = vld [vmem:[#allocation2 + $0x68] sm:$0xff]
    %v64 = vld [vmem:[#allocation2 + $0x70] sm:$0xff]
    %v65 = vld [vmem:[#allocation2 + $0x78] sm:$0xff]
    %v66 = vld [vmem:[%s2] sm:$0x1]
    %v68 = vlaneseq
    %v69 = vshrl.u32 %v68, 7
    %v70 = vsub.s32 0, %v69
    %v71 = vrot.slane %v66, %v70
    %73 = vmatprep.subr.mxu0 0.0
    %74 = vmatpush1.msra.mxu0 %v65
    %75 = vmatprep.subr.mxu0 0.0
    %76 = vmatpush1.msra.mxu0 %v64
    %77 = vmatprep.subr.mxu0 0.0
    %78 = vmatpush1.msra.mxu0 %v63
    %79 = vmatprep.subr.mxu0 0.0
    %80 = vmatpush1.msra.mxu0 %v62
    %81 = vmatprep.subr.mxu0 0.0
    %82 = vmatpush1.msra.mxu0 %v61
    %83 = vmatprep.subr.mxu0 0.0
    %84 = vmatpush1.msra.mxu0 %v60
    %85 = vmatprep.subr.mxu0 0.0
    %86 = vmatpush1.msra.mxu0 %v59
    %87 = vmatprep.subr.mxu0 0.0
    %88 = vmatpush1.msra.mxu0 %v58
    %89 = vmatprep.subr.mxu0 0.0
    %90 = vmatpush1.msra.mxu0 %v57
    %91 = vmatprep.subr.mxu0 0.0
    %92 = vmatpush1.msra.mxu0 %v56
    %93 = vmatprep.subr.mxu0 0.0
    %94 = vmatpush1.msra.mxu0 %v55
    %95 = vmatprep.subr.mxu0 0.0
    %96 = vmatpush1.msra.mxu0 %v54
    %97 = vmatprep.subr.mxu0 0.0
    %98 = vmatpush1.msra.mxu0 %v53
    %99 = vmatprep.subr.mxu0 0.0
    %100 = vmatpush1.msra.mxu0 %v52
    %101 = vmatprep.subr.mxu0 0.0
    %102 = vmatpush1.msra.mxu0 %v51
    %103 = vmatprep.subr.mxu0 0.0
    %104 = vmatpush1.msra.mxu0 %v50
    %105 = vmatprep.subr.mxu0 0.0
    %106 = vmatpush2.msra.mxu0 0.0
    %107 = vmatprep.subr.mxu0 0.0
    %108 = vmatpush2.msra.mxu0 0.0
    %109 = vmatprep.subr.mxu0 0.0
    %110 = vmatpush2.msra.mxu0 0.0
    %111 = vmatprep.subr.mxu0 0.0
    %112 = vmatpush2.msra.mxu0 0.0
    %113 = vmatprep.subr.mxu0 0.0
    %114 = vmatpush2.msra.mxu0 0.0
    %115 = vmatprep.subr.mxu0 0.0
    %116 = vmatpush2.msra.mxu0 0.0
    %117 = vmatprep.subr.mxu0 0.0
    %118 = vmatpush2.msra.mxu0 0.0
    %119 = vmatprep.subr.mxu0 0.0
    %120 = vmatpush2.msra.mxu0 0.0
    %121 = vmatprep.subr.mxu0 0.0
    %122 = vmatpush2.msra.mxu0 0.0
    %123 = vmatprep.subr.mxu0 0.0
    %124 = vmatpush2.msra.mxu0 0.0
    %125 = vmatprep.subr.mxu0 0.0
    %126 = vmatpush2.msra.mxu0 0.0
    %127 = vmatprep.subr.mxu0 0.0
    %128 = vmatpush2.msra.mxu0 0.0
    %129 = vmatprep.subr.mxu0 0.0
    %130 = vmatpush2.msra.mxu0 0.0
    %131 = vmatprep.subr.mxu0 0.0
    %132 = vmatpush2.msra.mxu0 0.0
    %133 = vmatprep.subr.mxu0 0.0
    %134 = vmatpush2.msra.mxu0 0.0
    %135 = vmatprep.subr.mxu0 0.0
    %136 = vmatpush2.msra.mxu0 0.0
    %137 = vmatprep.mubr.f32.mxu0 0.0
    %138 = vmatmul.mubr.f32.gmra.mxu0 %v49
    %v139 = vpop.f32.mrf.mxu0
    %v140 = vadd.f32 %v71, %v139
    %v141 = vpop.f32.mrf.mxu0
    %142 = vdwg.mxu0
    %v143 = vmul.f32 %v140, 0.5
    %v144 = vmul.f32 %v140, 0.70710677
    %v145 = verf.f32.pop %v144
    %v146 = vadd.f32 %v145, 1.0
    %v147 = vmul.f32 %v143, %v146
    %v148 = vld [vmem:[#allocation5] sm:$0xff]
    %v149 = vld [vmem:[#allocation5 + $0x8] sm:$0xff]
    %v150 = vld [vmem:[#allocation5 + $0x10] sm:$0xff]
    %v151 = vld [vmem:[#allocation5 + $0x18] sm:$0xff]
    %v152 = vld [vmem:[#allocation5 + $0x20] sm:$0xff]
    %v153 = vld [vmem:[#allocation5 + $0x28] sm:$0xff]
    %v154 = vld [vmem:[#allocation5 + $0x30] sm:$0xff]
    %v155 = vld [vmem:[#allocation5 + $0x38] sm:$0xff]
    %v156 = vld [vmem:[#allocation5 + $0x40] sm:$0xff]
    %v157 = vld [vmem:[#allocation5 + $0x48] sm:$0xff]
    %v158 = vld [vmem:[#allocation5 + $0x50] sm:$0xff]
    %v159 = vld [vmem:[#allocation5 + $0x58] sm:$0xff]
    %v160 = vld [vmem:[#allocation5 + $0x60] sm:$0xff]
    %v161 = vld [vmem:[#allocation5 + $0x68] sm:$0xff]
    %v162 = vld [vmem:[#allocation5 + $0x70] sm:$0xff]
    %v163 = vld [vmem:[#allocation5 + $0x78] sm:$0xff]
    %v164 = vld [vmem:[%s4] sm:$0x1]
    %v166 = vlaneseq
    %v167 = vshrl.u32 %v166, 7
    %v168 = vsub.s32 0, %v167
    %v169 = vrot.slane %v164, %v168
    %171 = vmatprep.subr.mxu0 0.0
    %172 = vmatpush1.msra.mxu0 %v163
    %173 = vmatprep.subr.mxu0 0.0
    %174 = vmatpush1.msra.mxu0 %v162
    %175 = vmatprep.subr.mxu0 0.0
    %176 = vmatpush1.msra.mxu0 %v161
    %177 = vmatprep.subr.mxu0 0.0
    %178 = vmatpush1.msra.mxu0 %v160
    %179 = vmatprep.subr.mxu0 0.0
    %180 = vmatpush1.msra.mxu0 %v159
    %181 = vmatprep.subr.mxu0 0.0
    %182 = vmatpush1.msra.mxu0 %v158
    %183 = vmatprep.subr.mxu0 0.0
    %184 = vmatpush1.msra.mxu0 %v157
    %185 = vmatprep.subr.mxu0 0.0
    %186 = vmatpush1.msra.mxu0 %v156
    %187 = vmatprep.subr.mxu0 0.0
    %188 = vmatpush1.msra.mxu0 %v155
    %189 = vmatprep.subr.mxu0 0.0
    %190 = vmatpush1.msra.mxu0 %v154
    %191 = vmatprep.subr.mxu0 0.0
    %192 = vmatpush1.msra.mxu0 %v153
    %193 = vmatprep.subr.mxu0 0.0
    %194 = vmatpush1.msra.mxu0 %v152
    %195 = vmatprep.subr.mxu0 0.0
    %196 = vmatpush1.msra.mxu0 %v151
    %197 = vmatprep.subr.mxu0 0.0
    %198 = vmatpush1.msra.mxu0 %v150
    %199 = vmatprep.subr.mxu0 0.0
    %200 = vmatpush1.msra.mxu0 %v149
    %201 = vmatprep.subr.mxu0 0.0
    %202 = vmatpush1.msra.mxu0 %v148
    %203 = vmatprep.subr.mxu0 0.0
    %204 = vmatpush2.msra.mxu0 0.0
    %205 = vmatprep.subr.mxu0 0.0
    %206 = vmatpush2.msra.mxu0 0.0
    %207 = vmatprep.subr.mxu0 0.0
    %208 = vmatpush2.msra.mxu0 0.0
    %209 = vmatprep.subr.mxu0 0.0
    %210 = vmatpush2.msra.mxu0 0.0
    %211 = vmatprep.subr.mxu0 0.0
    %212 = vmatpush2.msra.mxu0 0.0
    %213 = vmatprep.subr.mxu0 0.0
    %214 = vmatpush2.msra.mxu0 0.0
    %215 = vmatprep.subr.mxu0 0.0
    %216 = vmatpush2.msra.mxu0 0.0
    %217 = vmatprep.subr.mxu0 0.0
    %218 = vmatpush2.msra.mxu0 0.0
    %219 = vmatprep.subr.mxu0 0.0
    %220 = vmatpush2.msra.mxu0 0.0
    %221 = vmatprep.subr.mxu0 0.0
    %222 = vmatpush2.msra.mxu0 0.0
    %223 = vmatprep.subr.mxu0 0.0
    %224 = vmatpush2.msra.mxu0 0.0
    %225 = vmatprep.subr.mxu0 0.0
    %226 = vmatpush2.msra.mxu0 0.0
    %227 = vmatprep.subr.mxu0 0.0
    %228 = vmatpush2.msra.mxu0 0.0
    %229 = vmatprep.subr.mxu0 0.0
    %230 = vmatpush2.msra.mxu0 0.0
    %231 = vmatprep.subr.mxu0 0.0
    %232 = vmatpush2.msra.mxu0 0.0
    %233 = vmatprep.subr.mxu0 0.0
    %234 = vmatpush2.msra.mxu0 0.0
    %235 = vmatprep.mubr.f32.mxu0 0.0
    %236 = vmatmul.mubr.f32.gmra.mxu0 %v147
    %v237 = vpop.f32.mrf.mxu0
    %v238 = vadd.f32 %v169, %v237
    %v239 = vpop.f32.mrf.mxu0
    %240 = vdwg.mxu0
    %241 = vst [vmem:[#allocation7] sm:$0xff] %v238
    // Predicated region
    $region30: #{mlp_forward.1} parent=1 // pred_check
      _
    $region31: #{mlp_forward.1} parent=1 // pred_check_branch
      %243 = sbr.rel (0) target = $region33
    $region32: #{mlp_forward.1} parent=1 // pred_region
      %s245 = ssub.s32 128, 128
      %246 = vsyncadd [#allocation4], %s245
      %s248 = sshll.u32 [#allocation7], 4
      %s249 = int_to_ptr.vmem [resolvable:$true] %s248
      %251 = dma.vmem_to_hbm [thread:$0]  %s249, 128, %s5, [#allocation4]
    $region33: #{mlp_forward.1} parent=1 // pred_fallthru
      _
    // Predicated region
    $region34: #{mlp_forward.1} parent=1 // pred_check
      _
    $region35: #{mlp_forward.1} parent=1 // pred_check_branch
      %253 = sbr.rel (0) target = $region37
    $region36: #{mlp_forward.1} parent=1 // pred_region
      %254 = dma.done [#allocation4], 128
    $region37: #{mlp_forward.1} parent=1 // pred_fallthru
      _
    %255 = vsyncpa [#allocation3], 1
    %256 = vsyncpa [#allocation6], 1
    %257 = vsyncpa [#allocation4], 1

</llo_original>
